<compile_context>
chip_gen: v7x
topology: tpu7x:2x2x1
jax: 0.10.0
libtpu: 0.0.40
codegen_flags: <defaults>
</compile_context>

<pallas_src>
import functools

import jax
import jax.numpy as jnp
from jax import lax
from jax.experimental import pallas as pl
from jax.experimental.pallas import tpu as pltpu


# --------------------------------------------------------------------------- #
# Kernel
# --------------------------------------------------------------------------- #
def _latent_kernel(x_ref, w_ref, b_ref, eps_ref, out_ref, acc_ref,
                   *, n_tokens, tt, z_pad):
    """Grid = (batch tiles [parallel], token tiles [arbitrary / reduction])."""
    ti = pl.program_id(1)
    last = pl.num_programs(1) - 1

    @pl.when(ti == 0)
    def _init():
        acc_ref[...] = jnp.zeros_like(acc_ref)

    rem = n_tokens % tt  # static Python int
    if rem == 0:
        # f32 accumulation without materializing an upcast copy of the block.
        acc_ref[...] += jnp.sum(x_ref[...], axis=1, dtype=jnp.float32)
    else:
        @pl.when(ti != last)
        def _full_tile():
            acc_ref[...] += jnp.sum(x_ref[...], axis=1, dtype=jnp.float32)

        @pl.when(ti == last)
        def _tail_tile():
            # Only the first `rem` token rows of the final tile are valid
            # (static slice -> no per-element mask materialization).
            acc_ref[...] += jnp.sum(x_ref[:, :rem, :], axis=1,
                                    dtype=jnp.float32)

    @pl.when(ti == last)
    def _finalize():
        xt = acc_ref[...] * (1.0 / float(n_tokens))              # (tb, D)

        # Fused mu/logvar Linear: one MXU op contracting over D against the
        # concatenated, lane-padded (2*Zp, D) weight (PyTorch (out,in) layout).
        y = lax.dot_general(
            xt, w_ref[...],
            dimension_numbers=(((1,), (1,)), ((), ())),
            preferred_element_type=jnp.float32) + b_ref[...]     # (tb, 2*Zp)

        mu = y[:, :z_pad]                                        # lane-aligned
        lv = y[:, z_pad:]
        z = eps_ref[...] * jnp.exp(0.5 * lv) + mu                # reparameterize

        # Single lane-dense output slab: [z | mu | lv] -> (tb, 3*Zp)
        out_ref[...] = jnp.concatenate([z, y], axis=1).astype(out_ref.dtype)


# --------------------------------------------------------------------------- #
# Parameter prep / tiling heuristics (outside the per-call hot path)
# --------------------------------------------------------------------------- #
def _round_up(v, m):
    return ((v + m - 1) // m) * m


def _round_down(v, m):
    return (v // m) * m


def fuse_params(w_mu, b_mu, w_lv, b_lv):
    """Fuse the two Linear layers and lane-pad Z to a multiple of 128."""
    z_dim, d = w_mu.shape
    z_pad = _round_up(z_dim, 128)
    w = jnp.zeros((2 * z_pad, d), jnp.float32)
    w = w.at[:z_dim, :].set(w_mu).at[z_pad:z_pad + z_dim, :].set(w_lv)
    b = jnp.zeros((2 * z_pad,), jnp.float32)
    b = b.at[:z_dim].set(b_mu).at[z_pad:z_pad + z_dim].set(b_lv)
    return w, b[None, :]


def _vmem_limit_bytes():
    """Explicit per-generation scoped-VMEM limit (with headroom)."""
    phys = 64 << 20                                  # conservative: v7x per-TC
    try:
        info_fn = getattr(pltpu, "get_tpu_info", None)
        if info_fn is not None:
            phys = int(info_fn().vmem_capacity_bytes)
    except Exception:
        phys = 64 << 20
    # ~96 MiB on v5e/v6e (128 MiB physical), ~48 MiB on v7x (64 MiB physical).
    return min((phys * 3) // 4, 96 << 20)


def _select_tiles(B, T, D, x_itemsize, z_pad, budget_bytes):
    """VMEM-byte-budget-driven (tb, tt): maximize the streaming (token) tile
    first; grow the batch tile only if the whole token axis already fits."""
    # Tile-size-independent residents: fused weight + bias (double-buffered).
    fixed = 2 * (2 * z_pad) * D * 4 + 2 * (2 * z_pad) * 4
    avail = max(budget_bytes - fixed, 1 << 20)

    def tb_overhead(tb):
        # f32 accumulator (single) + eps + output slab (double-buffered, f32).
        return tb * D * 4 + 2 * tb * z_pad * 4 + 2 * tb * 3 * z_pad * 4

    def x_block(tb, tt):
        return 2 * tb * tt * D * x_itemsize          # double-buffered x stream

    # Batch tile: modest so per-row DMA runs stay long (tt*D contiguous) and
    # grid[0] >= 2 whenever B >= 16 (v7x megacore sharding of the batch axis).
    tb = B if B <= 8 else 8

    tt_max = max((avail - tb_overhead(tb)) // (2 * tb * D * x_itemsize), 1)
    if tt_max >= T:
        tt = T
        # Whole token axis fits in one tile: grow tb (x2, multiples of 8) to
        # cut grid-step overhead, but keep >= 2 batch tiles when B >= 16.
        if B > 8:
            tb_cap = _round_down(max(B // 2, 8), 8) if B >= 16 else B
            cand = tb
            while (cand * 2 <= tb_cap and
                   x_block(cand * 2, tt) + tb_overhead(cand * 2) <= avail):
                cand *= 2
            tb = cand
    else:
        tt = max(8, _round_down(int(tt_max), 8)) if T >= 8 else T
        tt = min(tt, T)
    return tb, tt


# --------------------------------------------------------------------------- #
# Forward wrapper
# --------------------------------------------------------------------------- #
def latent_generator_forward(x, w_pad, b_pad, eps, z_dim, *, tile_override=None):
    """
    x:     (Tokens, Batch, Dim)
    w_pad: (2*Zp, Dim)  rows [0:Z]=W_mu, [Zp:Zp+Z]=W_lv (lane-padded, (out,in))
    b_pad: (1, 2*Zp)
    eps:   (Batch, Z)
    returns (z, mu, lv) each (Batch, 1, Z)
    """
    T, B, D = x.shape
    two_zp, Dw = w_pad.shape
    assert Dw == D and two_zp % 2 == 0
    z_pad = two_zp // 2
    assert z_dim <= z_pad

    # torch .view(B, T, D): pure row-major reinterpretation (deliberately
    # interleaves tokens/batch exactly like the PyTorch module -- NOT a transpose).
    x_r = jnp.reshape(x, (B, T, D))

    # Lane-pad eps so the (tb, Zp) block is a dense, full-width load.
    eps_pad = jnp.pad(eps.astype(jnp.float32), ((0, 0), (0, z_pad - z_dim)))

    vmem_limit = _vmem_limit_bytes()
    if tile_override is not None:
        tb, tt = tile_override
    else:
        tb, tt = _select_tiles(B, T, D, x.dtype.itemsize, z_pad,
                               budget_bytes=int(vmem_limit * 0.75))
    grid = (pl.cdiv(B, tb), pl.cdiv(T, tt))

    # Advisory cost: this call is purely HBM-streaming-bound on x.
    cost = pl.CostEstimate(
        flops=int(2 * B * D * 2 * z_pad + B * T * D),
        transcendentals=int(B * z_pad),
        bytes_accessed=int(x.size * x.dtype.itemsize
                           + w_pad.size * 4 + b_pad.size * 4
                           + eps_pad.size * 4 + B * 3 * z_pad * 4),
    )

    out = pl.pallas_call(
        functools.partial(_latent_kernel, n_tokens=T, tt=tt, z_pad=z_pad),
        out_shape=jax.ShapeDtypeStruct((B, 3 * z_pad), jnp.float32),
        grid_spec=pltpu.PrefetchScalarGridSpec(
            num_scalar_prefetch=0,
            grid=grid,
            in_specs=[
                # x stream: full D in one block -> each per-row DMA is a single
                # contiguous tt*D run.  Do NOT tile D.
                pl.BlockSpec((tb, tt, D), lambda bi, ti: (bi, ti, 0)),
                pl.BlockSpec((2 * z_pad, D), lambda bi, ti: (0, 0)),   # fused W
                pl.BlockSpec((1, 2 * z_pad), lambda bi, ti: (0, 0)),   # fused b
                pl.BlockSpec((tb, z_pad), lambda bi, ti: (bi, 0)),     # eps
            ],
            out_specs=pl.BlockSpec((tb, 3 * z_pad), lambda bi, ti: (bi, 0)),
            scratch_shapes=[pltpu.VMEM((tb, D), jnp.float32)],         # token-sum
        ),
        compiler_params=pltpu.CompilerParams(
            dimension_semantics=("parallel", "arbitrary"),
            vmem_limit_bytes=int(vmem_limit)),
        cost_estimate=cost,
    )(x_r, w_pad, b_pad, eps_pad)

    z = out[:, :z_dim].reshape(B, 1, z_dim)
    mu = out[:, z_pad:z_pad + z_dim].reshape(B, 1, z_dim)
    lv = out[:, 2 * z_pad:2 * z_pad + z_dim].reshape(B, 1, z_dim)
    return z, mu, lv


# --------------------------------------------------------------------------- #
# Pure-JAX reference (mirrors the PyTorch module exactly)
# --------------------------------------------------------------------------- #
def _reference(x, w_mu, b_mu, w_lv, b_lv, eps):
    T, B, D = x.shape
    x_r = jnp.reshape(x, (B, T, D))
    xt = jnp.mean(x_r, axis=1)                          # (B, D)
    mu = xt @ w_mu.T + b_mu                             # (B, Z)
    lv = xt @ w_lv.T + b_lv
    z = eps * jnp.exp(0.5 * lv) + mu
    Z = w_mu.shape[0]
    return z.reshape(B, 1, Z), mu.reshape(B, 1, Z), lv.reshape(B, 1, Z)


if __name__ == "__main__":
    # TODO(synk): eps (torch.randn_like inside forward) is generated host-side
    # with jax.random and passed in, so the kernel is deterministic/testable.
    def run_case(tokens, batch, x_dim, z_dim, tile_override=None):
        key = jax.random.PRNGKey(0)
        kx, kwm, kbm, kwl, kbl, keps = jax.random.split(key, 6)

        x = jax.random.normal(kx, (tokens, batch, x_dim), dtype=jnp.float32)

        # PyTorch Linear-style uniform(-1/sqrt(fan_in), +) init
        bound = 1.0 / (x_dim ** 0.5)
        w_mu = jax.random.uniform(kwm, (z_dim, x_dim), minval=-bound, maxval=bound,
                                  dtype=jnp.float32)
        b_mu = jax.random.uniform(kbm, (z_dim,), minval=-bound, maxval=bound,
                                  dtype=jnp.float32)
        w_lv = jax.random.uniform(kwl, (z_dim, x_dim), minval=-bound, maxval=bound,
                                  dtype=jnp.float32)
        b_lv = jax.random.uniform(kbl, (z_dim,), minval=-bound, maxval=bound,
                                  dtype=jnp.float32)
        eps = jax.random.normal(keps, (batch, z_dim), dtype=jnp.float32)

        w_pad, b_pad = fuse_params(w_mu, b_mu, w_lv, b_lv)
        z, mu, lv = latent_generator_forward(x, w_pad, b_pad, eps, z_dim,
                                             tile_override=tile_override)
        jax.block_until_ready((z, mu, lv))

        z_ref, mu_ref, lv_ref = _reference(x, w_mu, b_mu, w_lv, b_lv, eps)
        assert z.shape == (batch, 1, z_dim)
        assert mu.shape == (batch, 1, z_dim)
        assert lv.shape == (batch, 1, z_dim)
        assert jnp.allclose(mu, mu_ref, atol=1e-5, rtol=1e-5)
        assert jnp.allclose(lv, lv_ref, atol=1e-5, rtol=1e-5)
        assert jnp.allclose(z, z_ref, atol=1e-5, rtol=1e-5)

    # Case 1: small canonical shapes (budget-driven tiles; whole T in one tile).
    run_case(tokens=8, batch=2, x_dim=32, z_dim=16)
    # Case 2: non-divisor T and B with forced small tiles -> exercises the cdiv
    # grid, the statically-sliced masked token tail, multi-tile accumulation,
    # and the partial last batch block (OOB writes dropped).
    run_case(tokens=20, batch=10, x_dim=128, z_dim=16, tile_override=(8, 8))

    print("KERNEL_OK")
</pallas_src>

<mosaic_0001>
module attributes {stable_mosaic.version = 11 : i64} {
  func.func @_latent_kernel(%arg0: i32, %arg1: i32, %arg2: memref<2x8x32xf32, #tpu.memory_space<vmem>>, %arg3: memref<256x32xf32, #tpu.memory_space<vmem>>, %arg4: memref<1x256xf32, #tpu.memory_space<vmem>>, %arg5: memref<2x128xf32, #tpu.memory_space<vmem>>, %arg6: memref<2x384xf32, #tpu.memory_space<vmem>>, %arg7: memref<2x32xf32, #tpu.memory_space<vmem>>) attributes {dimension_semantics = [#tpu.dimension_semantics<parallel>, #tpu.dimension_semantics<arbitrary>], iteration_bounds = array<i64: 1, 1>, scalar_prefetch = 0 : i64, scratch_operands = 1 : i64, tpu.core_type = #tpu.core_type<tc>, window_params = [{transform_indices = @transform_0, window_bounds = array<i64: 2, 8, 32>}, {pipeline_mode = #tpu.pipeline_mode<synchronous>, transform_indices = @transform_1, window_bounds = array<i64: 256, 32>}, {pipeline_mode = #tpu.pipeline_mode<synchronous>, transform_indices = @transform_2, window_bounds = array<i64: 1, 256>}, {transform_indices = @transform_3, window_bounds = array<i64: 2, 128>}, {transform_indices = @transform_4, window_bounds = array<i64: 2, 384>}]} {
    %c0_i32 = arith.constant 0 : i32
    %0 = arith.cmpi eq, %arg1, %c0_i32 : i32
    %1 = arith.extui %0 : i1 to i32
    %c0_i32_0 = arith.constant 0 : i32
    %2 = arith.cmpi ne, %1, %c0_i32_0 : i32
    scf.if %2 {
      %cst_9 = arith.constant 0.000000e+00 : f32
      %11 = vector.broadcast %cst_9 : f32 to vector<2x32xf32>
      %c0_10 = arith.constant 0 : index
      %c0_11 = arith.constant 0 : index
      %12 = vector.load %arg7[%c0_10, %c0_11] : memref<2x32xf32, #tpu.memory_space<vmem>>, vector<2x32xf32>
      tpu.vector_store %arg7[%c0_10, %c0_11], %11 {strides = array<i32>} : memref<2x32xf32, #tpu.memory_space<vmem>>, vector<2x32xf32>,
    } else {
    }
    %c0 = arith.constant 0 : index
    %c0_1 = arith.constant 0 : index
    %3 = vector.load %arg7[%c0, %c0_1] : memref<2x32xf32, #tpu.memory_space<vmem>>, vector<2x32xf32>
    %c0_2 = arith.constant 0 : index
    %c0_3 = arith.constant 0 : index
    %c0_4 = arith.constant 0 : index
    %4 = vector.load %arg2[%c0_2, %c0_3, %c0_4] : memref<2x8x32xf32, #tpu.memory_space<vmem>>, vector<2x8x32xf32>
    %cst = arith.constant dense<0.000000e+00> : vector<2x32xf32>
    %5 = vector.multi_reduction <add>, %4, %cst [1] : vector<2x8x32xf32> to vector<2x32xf32>
    %6 = arith.addf %3, %5 : vector<2x32xf32>
    %c0_5 = arith.constant 0 : index
    %c0_6 = arith.constant 0 : index
    %7 = vector.load %arg7[%c0_5, %c0_6] : memref<2x32xf32, #tpu.memory_space<vmem>>, vector<2x32xf32>
    tpu.vector_store %arg7[%c0_5, %c0_6], %6 {strides = array<i32>} : memref<2x32xf32, #tpu.memory_space<vmem>>, vector<2x32xf32>,
    %c0_i32_7 = arith.constant 0 : i32
    %8 = arith.cmpi eq, %arg1, %c0_i32_7 : i32
    %9 = arith.extui %8 : i1 to i32
    %c0_i32_8 = arith.constant 0 : i32
    %10 = arith.cmpi ne, %9, %c0_i32_8 : i32
    scf.if %10 {
      %c0_9 = arith.constant 0 : index
      %c0_10 = arith.constant 0 : index
      %11 = vector.load %arg7[%c0_9, %c0_10] : memref<2x32xf32, #tpu.memory_space<vmem>>, vector<2x32xf32>
      %cst_11 = arith.constant 1.250000e-01 : f32
      %12 = vector.broadcast %cst_11 : f32 to vector<2x32xf32>
      %13 = arith.mulf %11, %12 : vector<2x32xf32>
      %c0_12 = arith.constant 0 : index
      %c0_13 = arith.constant 0 : index
      %14 = vector.load %arg3[%c0_12, %c0_13] : memref<256x32xf32, #tpu.memory_space<vmem>>, vector<256x32xf32>
      %cst_14 = arith.constant dense<0.000000e+00> : vector<2x256xf32>
      %15 = tpu.matmul %13, %14, %cst_14 {dimension_numbers = #tpu.dot_dimension_numbers<[1], [1], [0], [0], [0, 0, 1, 0], [], []>} : vector<2x32xf32>, vector<256x32xf32>, vector<2x256xf32> -> vector<2x256xf32>
      %c0_15 = arith.constant 0 : index
      %c0_16 = arith.constant 0 : index
      %16 = vector.load %arg4[%c0_15, %c0_16] : memref<1x256xf32, #tpu.memory_space<vmem>>, vector<1x256xf32>
      %17 = vector.broadcast %16 : vector<1x256xf32> to vector<2x256xf32>
      %18 = arith.addf %15, %17 : vector<2x256xf32>
      %19 = vector.extract_strided_slice %18 {offsets = [0, 0], sizes = [2, 128], strides = [1, 1]} : vector<2x256xf32> to vector<2x128xf32>
      %20 = vector.extract_strided_slice %18 {offsets = [0, 128], sizes = [2, 128], strides = [1, 1]} : vector<2x256xf32> to vector<2x128xf32>
      %c0_17 = arith.constant 0 : index
      %c0_18 = arith.constant 0 : index
      %21 = vector.load %arg5[%c0_17, %c0_18] : memref<2x128xf32, #tpu.memory_space<vmem>>, vector<2x128xf32>
      %cst_19 = arith.constant 5.000000e-01 : f32
      %22 = vector.broadcast %cst_19 : f32 to vector<2x128xf32>
      %23 = arith.mulf %22, %20 : vector<2x128xf32>
      %24 = math.exp %23 : vector<2x128xf32>
      %25 = arith.mulf %21, %24 : vector<2x128xf32>
      %26 = arith.addf %25, %19 : vector<2x128xf32>
      %27 = tpu.concatenate %26, %18 in 1 : vector<2x128xf32>, vector<2x256xf32> -> vector<2x384xf32>
      %c0_20 = arith.constant 0 : index
      %c0_21 = arith.constant 0 : index
      %28 = vector.load %arg6[%c0_20, %c0_21] : memref<2x384xf32, #tpu.memory_space<vmem>>, vector<2x384xf32>
      tpu.vector_store %arg6[%c0_20, %c0_21], %27 {strides = array<i32>} : memref<2x384xf32, #tpu.memory_space<vmem>>, vector<2x384xf32>,
    } else {
    }
    return
  }
  func.func @transform_0(%arg0: i32, %arg1: i32) -> (i32, i32, i32) {
    %c0_i32 = arith.constant 0 : i32
    %c0_i32_0 = arith.constant 0 : i32
    return %arg0, %arg1, %c0_i32 : i32, i32, i32
  }
  func.func @transform_1(%arg0: i32, %arg1: i32) -> (i32, i32) {
    %c0_i32 = arith.constant 0 : i32
    %c0_i32_0 = arith.constant 0 : i32
    %c0_i32_1 = arith.constant 0 : i32
    return %c0_i32, %c0_i32_0 : i32, i32
  }
  func.func @transform_2(%arg0: i32, %arg1: i32) -> (i32, i32) {
    %c0_i32 = arith.constant 0 : i32
    %c0_i32_0 = arith.constant 0 : i32
    %c0_i32_1 = arith.constant 0 : i32
    return %c0_i32, %c0_i32_0 : i32, i32
  }
  func.func @transform_3(%arg0: i32, %arg1: i32) -> (i32, i32) {
    %c0_i32 = arith.constant 0 : i32
    %c0_i32_0 = arith.constant 0 : i32
    return %arg0, %c0_i32 : i32, i32
  }
  func.func @transform_4(%arg0: i32, %arg1: i32) -> (i32, i32) {
    %c0_i32 = arith.constant 0 : i32
    %c0_i32_0 = arith.constant 0 : i32
    return %arg0, %c0_i32 : i32, i32
  }
}

</mosaic_0001>

<llo_original>
// kernel: tpu_custom_call.1
$region0: #{tpu_custom_call.1}
  #allocation0 [shape = 'u32[]', space=smem, size = 0x4, offset = 0x4, fixed_abs, tag = 'smem constant byte address 0x4 - core index']
  #allocation1 [shape = 'u32[144,128]{1,0:T(1,128)}', space=vmem, size = 0x12000, scoped, tag = 'internal scratch']
  #allocation2 [shape = 'f32[2,32]{1,0:T(2,128)}', space=vmem, size = 0x400, scoped, tag = 'scratch operand']
  %s0 = inlined_call_operand.vmem [shape: f32[2,8,32], index: 0, kind: input, shape index: {}]
  %s1 = inlined_call_operand.vmem [shape: f32[256,32], index: 1, kind: input, shape index: {}]
  %s2 = inlined_call_operand.vmem [shape: f32[1,256], index: 2, kind: input, shape index: {}]
  %s3 = inlined_call_operand.vmem [shape: f32[2,128], index: 3, kind: input, shape index: {}]
  %s4 = inlined_call_operand.hbm [shape: f32[2,384], index: 4, kind: output, shape index: {}]
  %s5 = sld [smem:[#allocation0]]
  $region34: #{tpu_custom_call.1} parent=0
    _
  %s7 = ssub.s32 1, %s5
  %s8 = scalar_select 0, %s7, %s5
  $region1: #{tpu_custom_call.1} parent=0
    #allocation3 [shape = 'u8[3072]{0}', space=vmem, size = 0xc00, scoped, tag = 'output window, operand 0, single buffered']
    #allocation4 [shape = 's32[1]{0}', space=sflag, size = 0x4, scoped, tag = 'scoped memory for tpu_custom_call.1']
    %9 = vsyncpa [#allocation4], 0
    // Predicated region
    $region2: #{tpu_custom_call.1} parent=1 // pred_check
      _
    $region3: #{tpu_custom_call.1} parent=1 // pred_check_branch
      %11 = sbr.rel (0) target = $region5
    $region4: #{tpu_custom_call.1} parent=1 // pred_region
      _
    $region5: #{tpu_custom_call.1} parent=1 // pred_fallthru
      _
    // Predicated region
    $region6: #{tpu_custom_call.1} parent=1 // pred_check
      _
    $region7: #{tpu_custom_call.1} parent=1 // pred_check_branch
      %13 = sbr.rel (0) target = $region9
    $region8: #{tpu_custom_call.1} parent=1 // pred_region
      _
    $region9: #{tpu_custom_call.1} parent=1 // pred_fallthru
      _
    // Predicated region
    $region10: #{tpu_custom_call.1} parent=1 // pred_check
      _
    $region11: #{tpu_custom_call.1} parent=1 // pred_check_branch
      %15 = sbr.rel (0) target = $region13
    $region12: #{tpu_custom_call.1} parent=1 // pred_region
      _
    $region13: #{tpu_custom_call.1} parent=1 // pred_fallthru
      _
    // Predicated region
    $region14: #{tpu_custom_call.1} parent=1 // pred_check
      _
    $region15: #{tpu_custom_call.1} parent=1 // pred_check_branch
      %17 = sbr.rel (0) target = $region17
    $region16: #{tpu_custom_call.1} parent=1 // pred_region
      _
    $region17: #{tpu_custom_call.1} parent=1 // pred_fallthru
      _
    %p18 = scmp.eq.s32.totalorder 0, 0
    // Predicated region
    $region18: #{tpu_custom_call.1} parent=1 // pred_check
      %p19 = pneg %p18
    $region19: #{tpu_custom_call.1} parent=1 // pred_check_branch
      %21 = sbr.rel (%p19) target = $region21
    $region20: #{tpu_custom_call.1} parent=1 // pred_region
      %vm22 = vcmask 254976
      %23 = vst.msk [vmem:[#allocation2] sm:$0x3] %vm22, 0.0
    $region21: #{tpu_custom_call.1} parent=1 // pred_fallthru
      _
    %v24 = vld [vmem:[#allocation2] sm:$0x3]
    %v25 = vld [vmem:[%s0] sm:$0xff]
    %v26 = vld [vmem:[%s0 + $0x8] sm:$0xff]
    %vm27 = vcmask 261120
    %v28 = vsel %vm27, %v25, 0.0
    %v29 = vrot.slane %v28, 4
    %v30 = vadd.f32 %v28, %v29
    %v31 = vrot.slane %v30, 2
    %v32 = vadd.f32 %v30, %v31
    %v33 = vrot.slane %v32, 1
    %v34 = vadd.f32 %v32, %v33
    %v35 = vsel %vm27, %v26, 0.0
    %v36 = vrot.slane %v35, 4
    %v37 = vadd.f32 %v35, %v36
    %v38 = vrot.slane %v37, 2
    %v39 = vadd.f32 %v37, %v38
    %v40 = vrot.slane %v39, 1
    %v41 = vadd.f32 %v39, %v40
    %vm44 = vcmask 1041409
    %v45 = vsel %vm44, %v41, %v34
    %v47 = vadd.f32 %v24, %v45
    %vm48 = vcmask 254976
    %49 = vst.msk [vmem:[#allocation2] sm:$0x3] %vm48, %v47
    // Predicated region
    $region22: #{tpu_custom_call.1} parent=1 // pred_check
      %p50 = pneg %p18
    $region23: #{tpu_custom_call.1} parent=1 // pred_check_branch
      %52 = sbr.rel (%p50) target = $region25
    $region24: #{tpu_custom_call.1} parent=1 // pred_region
      %v53 = vld [vmem:[#allocation2] sm:$0x3]
      %v54 = vmul.f32 %v53, 0.125
      %v55 = vld [vmem:[%s1] sm:$0xff]
      %v56 = vld [vmem:[%s1 + $0x8] sm:$0xff]
      %v57 = vld [vmem:[%s1 + $0x10] sm:$0xff]
      %v58 = vld [vmem:[%s1 + $0x18] sm:$0xff]
      %v59 = vld [vmem:[%s1 + $0x20] sm:$0xff]
      %v60 = vld [vmem:[%s1 + $0x28] sm:$0xff]
      %v61 = vld [vmem:[%s1 + $0x30] sm:$0xff]
      %v62 = vld [vmem:[%s1 + $0x38] sm:$0xff]
      %v63 = vld [vmem:[%s1 + $0x40] sm:$0xff]
      %v64 = vld [vmem:[%s1 + $0x48] sm:$0xff]
      %v65 = vld [vmem:[%s1 + $0x50] sm:$0xff]
      %v66 = vld [vmem:[%s1 + $0x58] sm:$0xff]
      %v67 = vld [vmem:[%s1 + $0x60] sm:$0xff]
      %v68 = vld [vmem:[%s1 + $0x68] sm:$0xff]
      %v69 = vld [vmem:[%s1 + $0x70] sm:$0xff]
      %v70 = vld [vmem:[%s1 + $0x78] sm:$0xff]
      %v71 = vld [vmem:[%s1 + $0x80] sm:$0xff]
      %v72 = vld [vmem:[%s1 + $0x88] sm:$0xff]
      %v73 = vld [vmem:[%s1 + $0x90] sm:$0xff]
      %v74 = vld [vmem:[%s1 + $0x98] sm:$0xff]
      %v75 = vld [vmem:[%s1 + $0xa0] sm:$0xff]
      %v76 = vld [vmem:[%s1 + $0xa8] sm:$0xff]
      %v77 = vld [vmem:[%s1 + $0xb0] sm:$0xff]
      %v78 = vld [vmem:[%s1 + $0xb8] sm:$0xff]
      %v79 = vld [vmem:[%s1 + $0xc0] sm:$0xff]
      %v80 = vld [vmem:[%s1 + $0xc8] sm:$0xff]
      %v81 = vld [vmem:[%s1 + $0xd0] sm:$0xff]
      %v82 = vld [vmem:[%s1 + $0xd8] sm:$0xff]
      %v83 = vld [vmem:[%s1 + $0xe0] sm:$0xff]
      %v84 = vld [vmem:[%s1 + $0xe8] sm:$0xff]
      %v85 = vld [vmem:[%s1 + $0xf0] sm:$0xff]
      %v86 = vld [vmem:[%s1 + $0xf8] sm:$0xff]
      %v87 = vld [vmem:[%s2] sm:$0x3]
      %v89 = vlaneseq
      %v90 = vshrl.u32 %v89, 7
      %v91 = vsub.s32 0, %v90
      %v92 = vrot.slane %v87, %v91
      %v93 = vlaneseq
      %v94 = vshrl.u32 %v93, 7
      %v95 = vsub.s32 1, %v94
      %v96 = vrot.slane %v87, %v95
      %v100 = vsel %vm27, %v54, 0
      %v103 = vsel %vm27, %v55, 0
      %v106 = vsel %vm27, %v56, 0
      %v109 = vsel %vm27, %v57, 0
      %v112 = vsel %vm27, %v58, 0
      %v115 = vsel %vm27, %v59, 0
      %v118 = vsel %vm27, %v60, 0
      %v121 = vsel %vm27, %v61, 0
      %v124 = vsel %vm27, %v62, 0
      %v127 = vsel %vm27, %v63, 0
      %v130 = vsel %vm27, %v64, 0
      %v133 = vsel %vm27, %v65, 0
      %v136 = vsel %vm27, %v66, 0
      %v139 = vsel %vm27, %v67, 0
      %v142 = vsel %vm27, %v68, 0
      %v145 = vsel %vm27, %v69, 0
      %v148 = vsel %vm27, %v70, 0
      %v151 = vsel %vm27, %v71, 0
      %v154 = vsel %vm27, %v72, 0
      %v157 = vsel %vm27, %v73, 0
      %v160 = vsel %vm27, %v74, 0
      %v163 = vsel %vm27, %v75, 0
      %v166 = vsel %vm27, %v76, 0
      %v169 = vsel %vm27, %v77, 0
      %v172 = vsel %vm27, %v78, 0
      %v175 = vsel %vm27, %v79, 0
      %v178 = vsel %vm27, %v80, 0
      %v181 = vsel %vm27, %v81, 0
      %v184 = vsel %vm27, %v82, 0
      %v187 = vsel %vm27, %v83, 0
      %v190 = vsel %vm27, %v84, 0
      %v193 = vsel %vm27, %v85, 0
      %v196 = vsel %vm27, %v86, 0
      %198 = vmatprep.subr.mxu0 0.0
      %199 = vmatpush1.xpose.msra.mxu0 %v103
      %200 = vmatprep.subr.mxu0 0.0
      %201 = vmatpush1.xpose.msra.mxu0 %v106
      %202 = vmatprep.subr.mxu0 0.0
      %203 = vmatpush1.xpose.msra.mxu0 %v109
      %204 = vmatprep.subr.mxu0 0.0
      %205 = vmatpush1.xpose.msra.mxu0 %v112
      %206 = vmatprep.subr.mxu0 0.0
      %207 = vmatpush1.xpose.msra.mxu0 %v115
      %208 = vmatprep.subr.mxu0 0.0
      %209 = vmatpush1.xpose.msra.mxu0 %v118
      %210 = vmatprep.subr.mxu0 0.0
      %211 = vmatpush1.xpose.msra.mxu0 %v121
      %212 = vmatprep.subr.mxu0 0.0
      %213 = vmatpush1.xpose.msra.mxu0 %v124
      %214 = vmatprep.subr.mxu0 0.0
      %215 = vmatpush1.xpose.msra.mxu0 %v127
      %216 = vmatprep.subr.mxu0 0.0
      %217 = vmatpush1.xpose.msra.mxu0 %v130
      %218 = vmatprep.subr.mxu0 0.0
      %219 = vmatpush1.xpose.msra.mxu0 %v133
      %220 = vmatprep.subr.mxu0 0.0
      %221 = vmatpush1.xpose.msra.mxu0 %v136
      %222 = vmatprep.subr.mxu0 0.0
      %223 = vmatpush1.xpose.msra.mxu0 %v139
      %224 = vmatprep.subr.mxu0 0.0
      %225 = vmatpush1.xpose.msra.mxu0 %v142
      %226 = vmatprep.subr.mxu0 0.0
      %227 = vmatpush1.xpose.msra.mxu0 %v145
      %228 = vmatprep.subr.mxu0 0.0
      %229 = vmatpush1.xpose.msra.mxu0 %v148
      %230 = vmatprep.subr.mxu0 0.0
      %231 = vmatpush1.xpose.msra.mxu0 %v151
      %232 = vmatprep.subr.mxu0 0.0
      %233 = vmatpush1.xpose.msra.mxu0 %v154
      %234 = vmatprep.subr.mxu0 0.0
      %235 = vmatpush1.xpose.msra.mxu0 %v157
      %236 = vmatprep.subr.mxu0 0.0
      %237 = vmatpush1.xpose.msra.mxu0 %v160
      %238 = vmatprep.subr.mxu0 0.0
      %239 = vmatpush1.xpose.msra.mxu0 %v163
      %240 = vmatprep.subr.mxu0 0.0
      %241 = vmatpush1.xpose.msra.mxu0 %v166
      %242 = vmatprep.subr.mxu0 0.0
      %243 = vmatpush1.xpose.msra.mxu0 %v169
      %244 = vmatprep.subr.mxu0 0.0
      %245 = vmatpush1.xpose.msra.mxu0 %v172
      %246 = vmatprep.subr.mxu0 0.0
      %247 = vmatpush1.xpose.msra.mxu0 %v175
      %248 = vmatprep.subr.mxu0 0.0
      %249 = vmatpush1.xpose.msra.mxu0 %v178
      %250 = vmatprep.subr.mxu0 0.0
      %251 = vmatpush1.xpose.msra.mxu0 %v181
      %252 = vmatprep.subr.mxu0 0.0
      %253 = vmatpush1.xpose.msra.mxu0 %v184
      %254 = vmatprep.subr.mxu0 0.0
      %255 = vmatpush1.xpose.msra.mxu0 %v187
      %256 = vmatprep.subr.mxu0 0.0
      %257 = vmatpush1.xpose.msra.mxu0 %v190
      %258 = vmatprep.subr.mxu0 0.0
      %259 = vmatpush1.xpose.msra.mxu0 %v193
      %260 = vmatprep.subr.mxu0 0.0
      %261 = vmatpush1.xpose.msra.mxu0 %v196
      %262 = vmatprep.mubr.f32.mxu0 0.0
      %263 = vmatmul.mubr.f32.gmra.mrb[0].mxu0 %v100
      %v264 = vpop.f32.mrb[0].mxu0
      %v265 = vadd.f32 %v92, %v264
      %v266 = vpop.f32.mrb[0].mxu0
      %v267 = vadd.f32 %v96, %v266
      %268 = vdwg.mxu0
      %v269 = vld [vmem:[%s3] sm:$0x3]
      %v270 = vmul.f32 %v267, 0.5
      %v271 = vmul.f32 %v270, 1.442695
      %v272 = vpow.pop %v271
      %v273 = vmul.f32 %v269, %v272
      %v274 = vadd.f32 %v273, %v265
      %v278 = vcombine.low %v274, %v265
      %v280 = vunpack.c.l.s4 1983009808
      %v281 = vunpack.c.0.s8 %v280
      %v282 = vlaneseq
      %v283 = vshrl.u32 %v282, 7
      %v284 = vsub.s32 %v281, %v283
      %v285 = vrot.slane %v278, %v284
      %v287 = vunpack.c.l.s4 1983009808
      %v288 = vunpack.c.0.s8 %v287
      %v289 = vlaneseq
      %v290 = vshrl.u32 %v289, 7
      %v291 = vsub.s32 %v288, %v290
      %v292 = vrot.slane %v267, %v291
      %v293 = vcombine.low %v285, %v292
      %295 = vst [vmem:[#allocation3] sm:$0x3f] %v293
    $region25: #{tpu_custom_call.1} parent=1 // pred_fallthru
      _
    // Predicated region
    $region26: #{tpu_custom_call.1} parent=1 // pred_check
      _
    $region27: #{tpu_custom_call.1} parent=1 // pred_check_branch
      %297 = sbr.rel (0) target = $region29
    $region28: #{tpu_custom_call.1} parent=1 // pred_region
      %s299 = ssub.s32 96, 96
      %300 = vsyncadd [#allocation4], %s299
      %s302 = sshll.u32 [#allocation3], 4
      %s303 = int_to_ptr.vmem [resolvable:$true] %s302
      %305 = dma.vmem_to_hbm [thread:$0]  %s303, 96, %s4, [#allocation4]
    $region29: #{tpu_custom_call.1} parent=1 // pred_fallthru
      _
    // Predicated region
    $region30: #{tpu_custom_call.1} parent=1 // pred_check
      _
    $region31: #{tpu_custom_call.1} parent=1 // pred_check_branch
      %307 = sbr.rel (0) target = $region33
    $region32: #{tpu_custom_call.1} parent=1 // pred_region
      %308 = dma.done [#allocation4], 96
    $region33: #{tpu_custom_call.1} parent=1 // pred_fallthru
      _
    %309 = vsyncpa [#allocation4], 1

</llo_original>
